<compile_context>
chip_gen: v7x
topology: tpu7x:2x2x1
jax: 0.10.0
libtpu: 0.0.40
codegen_flags: <defaults>
</compile_context>

<pallas_src>
import functools

import jax
import jax.numpy as jnp
from jax.experimental import pallas as pl
from jax.experimental.pallas import tpu as pltpu

EPS = 1e-5
VMEM_LIMIT = 32 * 1024 * 1024


def _im2col_3x3(x, H, W):
    """x: (C, H*W) -> (9*C, H*W).

    Taps are stacked (ky, kx) row-major, matching a weight reshape
    (Cout, Cin, 3, 3) -> (Cout, 3, 3, Cin) -> (Cout, 9*Cin).
    Zero padding (padding=1) is realized by lane-shifted windows of a
    zero-extended row plus an iota mask on the column borders.
    """
    C, P = x.shape
    pad = W + 1
    zcols = jnp.zeros((C, pad), x.dtype)
    xp = jnp.concatenate([zcols, x, zcols], axis=1)          # (C, P + 2W + 2)
    wcol = jax.lax.broadcasted_iota(jnp.int32, (1, P), 1) % W
    zero = jnp.zeros((), x.dtype)
    taps = []
    for dy in (-1, 0, 1):
        for dx in (-1, 0, 1):
            off = dy * W + dx
            win = xp[:, pad + off: pad + off + P]            # static lane slice
            if dx == 1:                                      # column w = W-1 invalid
                win = jnp.where(wcol < (W - 1), win, zero)
            elif dx == -1:                                   # column w = 0 invalid
                win = jnp.where(wcol >= 1, win, zero)
            taps.append(win)
    return jnp.concatenate(taps, axis=0)                     # (9*C, P)


def _conv_body(x_any, w_ref, b_ref, y_ref, stats_ref, H, W):
    """Fused 3x3 conv (single K=9*C matmul, bf16 x bf16 -> f32) + bias +
    per-channel sum / sumsq partials for the two-pass BatchNorm."""
    col = _im2col_3x3(x_any.astype(jnp.bfloat16), H, W)              # (9*Cin, P)
    acc = jnp.dot(w_ref[...], col, preferred_element_type=jnp.float32)
    acc = acc + b_ref[...]                                           # (Cout, P) f32
    y_ref[0] = acc.astype(y_ref.dtype)
    s = jnp.sum(acc, axis=1, keepdims=True)                          # (Cout, 1)
    ss = jnp.sum(acc * acc, axis=1, keepdims=True)
    stats_ref[0] = jnp.concatenate([s, ss], axis=1)                  # (Cout, 2)


def conv_stats_kernel(x_ref, w_ref, b_ref, y_ref, stats_ref, *, H, W):
    """Pass 1: conv1 + bias, emit pre-BN activation (bf16) + BN partials."""
    _conv_body(x_ref[0], w_ref, b_ref, y_ref, stats_ref, H, W)


def bn_relu_conv_stats_kernel(h_ref, s_ref, t_ref, w_ref, b_ref, y_ref,
                              stats_ref, *, H, W):
    """Pass 2: BN1 (folded scale/shift) + ReLU in f32, then conv2 + partials."""
    h = h_ref[0].astype(jnp.float32)
    h = jnp.maximum(h * s_ref[...] + t_ref[...], 0.0)
    _conv_body(h, w_ref, b_ref, y_ref, stats_ref, H, W)


def bn_relu_kernel(y_ref, s_ref, t_ref, o_ref):
    """Pass 3: BN2 (folded) + ReLU, lane-dense striped elementwise."""
    o_ref[0] = jnp.maximum(y_ref[0] * s_ref[...] + t_ref[...], 0.0)


def _fold_bn(gamma, beta, mean, var):
    scale = gamma * jax.lax.rsqrt(var + EPS)
    shift = beta - mean * scale
    return scale, shift


def double_conv(x_nchw, params):
    """Pallas DoubleConv.  x_nchw: (N, Cin, H, W) f32 -> (N, Cout, H, W) f32.

    params use PyTorch layouts: conv weights (out, in, 3, 3), all vectors (C,).
    BatchNorm uses training-mode batch statistics (biased variance), matching
    a freshly constructed nn.Module's default forward.
    """
    w1, b1, g1, be1, w2, b2, g2, be2 = params
    N, Cin, H, W = x_nchw.shape
    Cmid = w1.shape[0]
    Cout = w2.shape[0]
    P = H * W

    x = x_nchw.reshape(N, Cin, P)                       # free reshape, lane-dense

    # Weight repack: (O, I, 3, 3) -> (O, 9*I) in bf16; biases as (C, 1) f32.
    w1r = jnp.transpose(w1, (0, 2, 3, 1)).reshape(Cmid, 9 * Cin).astype(jnp.bfloat16)
    w2r = jnp.transpose(w2, (0, 2, 3, 1)).reshape(Cout, 9 * Cmid).astype(jnp.bfloat16)
    b1c = b1.reshape(Cmid, 1).astype(jnp.float32)
    b2c = b2.reshape(Cout, 1).astype(jnp.float32)

    cp_batch = pltpu.CompilerParams(
        dimension_semantics=("parallel",),
        vmem_limit_bytes=VMEM_LIMIT,
    )

    # ---------------- pass 1: conv1 + BN1 partial stats ----------------
    y1_pre, stats1 = pl.pallas_call(
        functools.partial(conv_stats_kernel, H=H, W=W),
        out_shape=(jax.ShapeDtypeStruct((N, Cmid, P), jnp.bfloat16),
                   jax.ShapeDtypeStruct((N, Cmid, 2), jnp.float32)),
        grid=(N,),
        in_specs=[
            pl.BlockSpec((1, Cin, P), lambda n: (n, 0, 0)),
            pl.BlockSpec((Cmid, 9 * Cin), lambda n: (0, 0)),
            pl.BlockSpec((Cmid, 1), lambda n: (0, 0)),
        ],
        out_specs=(
            pl.BlockSpec((1, Cmid, P), lambda n: (n, 0, 0)),
            pl.BlockSpec((1, Cmid, 2), lambda n: (n, 0, 0)),
        ),
        compiler_params=cp_batch,
    )(x, w1r, b1c)

    count = float(N * P)
    mean1 = jnp.sum(stats1[:, :, 0], axis=0) / count
    var1 = jnp.maximum(jnp.sum(stats1[:, :, 1], axis=0) / count - mean1 * mean1, 0.0)
    scale1, shift1 = _fold_bn(g1, be1, mean1, var1)
    scale1 = scale1.reshape(Cmid, 1).astype(jnp.float32)
    shift1 = shift1.reshape(Cmid, 1).astype(jnp.float32)

    # ------------- pass 2: BN1+ReLU -> conv2 + BN2 partial stats -------------
    y2_pre, stats2 = pl.pallas_call(
        functools.partial(bn_relu_conv_stats_kernel, H=H, W=W),
        out_shape=(jax.ShapeDtypeStruct((N, Cout, P), jnp.float32),
                   jax.ShapeDtypeStruct((N, Cout, 2), jnp.float32)),
        grid=(N,),
        in_specs=[
            pl.BlockSpec((1, Cmid, P), lambda n: (n, 0, 0)),
            pl.BlockSpec((Cmid, 1), lambda n: (0, 0)),
            pl.BlockSpec((Cmid, 1), lambda n: (0, 0)),
            pl.BlockSpec((Cout, 9 * Cmid), lambda n: (0, 0)),
            pl.BlockSpec((Cout, 1), lambda n: (0, 0)),
        ],
        out_specs=(
            pl.BlockSpec((1, Cout, P), lambda n: (n, 0, 0)),
            pl.BlockSpec((1, Cout, 2), lambda n: (n, 0, 0)),
        ),
        compiler_params=cp_batch,
    )(y1_pre, scale1, shift1, w2r, b2c)

    mean2 = jnp.sum(stats2[:, :, 0], axis=0) / count
    var2 = jnp.maximum(jnp.sum(stats2[:, :, 1], axis=0) / count - mean2 * mean2, 0.0)
    scale2, shift2 = _fold_bn(g2, be2, mean2, var2)
    scale2 = scale2.reshape(Cout, 1).astype(jnp.float32)
    shift2 = shift2.reshape(Cout, 1).astype(jnp.float32)

    # ---------------- pass 3: BN2 + ReLU (striped elementwise) ----------------
    PT = 128 if P % 128 == 0 else P
    out_flat = pl.pallas_call(
        bn_relu_kernel,
        out_shape=jax.ShapeDtypeStruct((N, Cout, P), x_nchw.dtype),
        grid=(N, P // PT),
        in_specs=[
            pl.BlockSpec((1, Cout, PT), lambda n, j: (n, 0, j)),
            pl.BlockSpec((Cout, 1), lambda n, j: (0, 0)),
            pl.BlockSpec((Cout, 1), lambda n, j: (0, 0)),
        ],
        out_specs=pl.BlockSpec((1, Cout, PT), lambda n, j: (n, 0, j)),
        compiler_params=pltpu.CompilerParams(
            dimension_semantics=("parallel", "parallel"),
            vmem_limit_bytes=VMEM_LIMIT,
        ),
    )(y2_pre, scale2, shift2)

    return out_flat.reshape(N, Cout, H, W)


def double_conv_reference(x, params, eps=EPS):
    """Pure-JAX reference matching PyTorch semantics (training-mode BN)."""
    w1, b1, g1, be1, w2, b2, g2, be2 = params

    def conv(x, w, b):
        y = jax.lax.conv_general_dilated(
            x, w, window_strides=(1, 1), padding="SAME",
            dimension_numbers=("NCHW", "OIHW", "NCHW"))
        return y + b.reshape(1, -1, 1, 1)

    def bn_relu(x, g, be):
        mean = jnp.mean(x, axis=(0, 2, 3), keepdims=True)
        var = jnp.mean((x - mean) ** 2, axis=(0, 2, 3), keepdims=True)
        y = (x - mean) / jnp.sqrt(var + eps)
        y = y * g.reshape(1, -1, 1, 1) + be.reshape(1, -1, 1, 1)
        return jnp.maximum(y, 0.0)

    h = bn_relu(conv(x, w1, b1), g1, be1)
    return bn_relu(conv(h, w2, b2), g2, be2)


if __name__ == "__main__":
    N, Cin, Cmid, Cout, H, W = 2, 4, 8, 8, 16, 16

    key = jax.random.PRNGKey(0)
    ks = jax.random.split(key, 9)
    x = jax.random.normal(ks[0], (N, Cin, H, W), jnp.float32)

    # PyTorch-layout parameters: conv weight (out, in, 3, 3), vectors (C,)
    w1 = 0.1 * jax.random.normal(ks[1], (Cmid, Cin, 3, 3), jnp.float32)
    b1 = 0.1 * jax.random.normal(ks[2], (Cmid,), jnp.float32)
    g1 = 1.0 + 0.1 * jax.random.normal(ks[3], (Cmid,), jnp.float32)
    be1 = 0.1 * jax.random.normal(ks[4], (Cmid,), jnp.float32)
    w2 = 0.1 * jax.random.normal(ks[5], (Cout, Cmid, 3, 3), jnp.float32)
    b2 = 0.1 * jax.random.normal(ks[6], (Cout,), jnp.float32)
    g2 = 1.0 + 0.1 * jax.random.normal(ks[7], (Cout,), jnp.float32)
    be2 = 0.1 * jax.random.normal(ks[8], (Cout,), jnp.float32)

    params = (w1, b1, g1, be1, w2, b2, g2, be2)

    out = jax.block_until_ready(double_conv(x, params))
    ref = jax.block_until_ready(double_conv_reference(x, params))

    assert out.shape == (N, Cout, H, W)
    max_err = float(jnp.max(jnp.abs(out - ref)))
    # bf16 matmul operands / bf16 intermediate -> loosened tolerance vs f32 ref
    assert jnp.allclose(out, ref, rtol=5e-2, atol=5e-2), max_err

    print("KERNEL_OK")
</pallas_src>

<mosaic_0001>
module attributes {stable_mosaic.version = 11 : i64} {
  func.func @conv_stats_kernel(%arg0: i32, %arg1: memref<1x4x256xf32, #tpu.memory_space<vmem>>, %arg2: memref<8x36xbf16, #tpu.memory_space<vmem>>, %arg3: memref<8x1xf32, #tpu.memory_space<vmem>>, %arg4: memref<1x8x256xbf16, #tpu.memory_space<vmem>>, %arg5: memref<1x8x2xf32, #tpu.memory_space<vmem>>) attributes {dimension_semantics = [#tpu.dimension_semantics<parallel>], iteration_bounds = array<i64: 2>, scalar_prefetch = 0 : i64, scratch_operands = 0 : i64, tpu.core_type = #tpu.core_type<tc>, window_params = [{transform_indices = @transform_0, window_bounds = array<i64: 1, 4, 256>}, {pipeline_mode = #tpu.pipeline_mode<synchronous>, transform_indices = @transform_1, window_bounds = array<i64: 8, 36>}, {pipeline_mode = #tpu.pipeline_mode<synchronous>, transform_indices = @transform_2, window_bounds = array<i64: 8, 1>}, {transform_indices = @transform_3, window_bounds = array<i64: 1, 8, 256>}, {transform_indices = @transform_4, window_bounds = array<i64: 1, 8, 2>}]} {
    %c0 = arith.constant 0 : index
    %c0_0 = arith.constant 0 : index
    %c0_1 = arith.constant 0 : index
    %0 = vector.load %arg1[%c0, %c0_0, %c0_1] : memref<1x4x256xf32, #tpu.memory_space<vmem>>, vector<1x4x256xf32>
    %1 = vector.shape_cast %0 : vector<1x4x256xf32> to vector<4x256xf32>
    %2 = arith.truncf %1 : vector<4x256xf32> to vector<4x256xbf16>
    %cst = arith.constant 0.000000e+00 : bf16
    %3 = vector.broadcast %cst : bf16 to vector<4x17xbf16>
    %4 = tpu.concatenate %3, %2, %3 in 1 : vector<4x17xbf16>, vector<4x256xbf16>, vector<4x17xbf16> -> vector<4x290xbf16>
    %5 = tpu.iota {dimensions = array<i32: 1>} : vector<1x256xi32>
    %c16_i32 = arith.constant 16 : i32
    %c0_i32 = arith.constant 0 : i32
    %6 = arith.cmpi eq, %c16_i32, %c0_i32 : i32
    %c1_i32 = arith.constant 1 : i32
    %7 = arith.select %6, %c1_i32, %c16_i32 : i32
    %8 = vector.broadcast %7 : i32 to vector<1x256xi32>
    %9 = arith.remsi %5, %8 : vector<1x256xi32>
    %c0_i32_2 = arith.constant 0 : i32
    %10 = vector.broadcast %c0_i32_2 : i32 to vector<1x256xi32>
    %11 = arith.cmpi ne, %9, %10 : vector<1x256xi32>
    %c0_i32_3 = arith.constant 0 : i32
    %12 = vector.broadcast %c0_i32_3 : i32 to vector<1x256xi32>
    %13 = arith.cmpi slt, %9, %12 : vector<1x256xi32>
    %c0_i32_4 = arith.constant 0 : i32
    %14 = arith.cmpi slt, %7, %c0_i32_4 : i32
    %15 = vector.broadcast %14 : i1 to vector<1x256xi1>
    %16 = vector.broadcast %15 : vector<1x256xi1> to vector<1x256xi1>
    %17 = arith.xori %13, %16 : vector<1x256xi1>
    %18 = arith.andi %17, %11 : vector<1x256xi1>
    %19 = vector.broadcast %7 : i32 to vector<1x256xi32>
    %20 = arith.addi %9, %19 : vector<1x256xi32>
    %21 = arith.select %18, %20, %9 : vector<1x256xi1>, vector<1x256xi32>
    %22 = vector.extract_strided_slice %4 {offsets = [0, 0], sizes = [4, 256], strides = [1, 1]} : vector<4x290xbf16> to vector<4x256xbf16>
    %c1_i32_5 = arith.constant 1 : i32
    %23 = vector.broadcast %c1_i32_5 : i32 to vector<1x256xi32>
    %24 = arith.cmpi sge, %21, %23 : vector<1x256xi32>
    %cst_6 = arith.constant 0.000000e+00 : bf16
    %25 = vector.shape_cast %24 : vector<1x256xi1> to vector<1x256xi1>
    %26 = vector.broadcast %25 : vector<1x256xi1> to vector<4x256xi1>
    %27 = vector.broadcast %cst_6 : bf16 to vector<4x256xbf16>
    %28 = arith.select %26, %22, %27 : vector<4x256xi1>, vector<4x256xbf16>
    %29 = vector.extract_strided_slice %4 {offsets = [0, 1], sizes = [4, 256], strides = [1, 1]} : vector<4x290xbf16> to vector<4x256xbf16>
    %30 = vector.extract_strided_slice %4 {offsets = [0, 2], sizes = [4, 256], strides = [1, 1]} : vector<4x290xbf16> to vector<4x256xbf16>
    %c15_i32 = arith.constant 15 : i32
    %31 = vector.broadcast %c15_i32 : i32 to vector<1x256xi32>
    %32 = arith.cmpi slt, %21, %31 : vector<1x256xi32>
    %cst_7 = arith.constant 0.000000e+00 : bf16
    %33 = vector.shape_cast %32 : vector<1x256xi1> to vector<1x256xi1>
    %34 = vector.broadcast %33 : vector<1x256xi1> to vector<4x256xi1>
    %35 = vector.broadcast %cst_7 : bf16 to vector<4x256xbf16>
    %36 = arith.select %34, %30, %35 : vector<4x256xi1>, vector<4x256xbf16>
    %37 = vector.extract_strided_slice %4 {offsets = [0, 16], sizes = [4, 256], strides = [1, 1]} : vector<4x290xbf16> to vector<4x256xbf16>
    %c1_i32_8 = arith.constant 1 : i32
    %38 = vector.broadcast %c1_i32_8 : i32 to vector<1x256xi32>
    %39 = arith.cmpi sge, %21, %38 : vector<1x256xi32>
    %cst_9 = arith.constant 0.000000e+00 : bf16
    %40 = vector.shape_cast %39 : vector<1x256xi1> to vector<1x256xi1>
    %41 = vector.broadcast %40 : vector<1x256xi1> to vector<4x256xi1>
    %42 = vector.broadcast %cst_9 : bf16 to vector<4x256xbf16>
    %43 = arith.select %41, %37, %42 : vector<4x256xi1>, vector<4x256xbf16>
    %44 = vector.extract_strided_slice %4 {offsets = [0, 17], sizes = [4, 256], strides = [1, 1]} : vector<4x290xbf16> to vector<4x256xbf16>
    %45 = vector.extract_strided_slice %4 {offsets = [0, 18], sizes = [4, 256], strides = [1, 1]} : vector<4x290xbf16> to vector<4x256xbf16>
    %c15_i32_10 = arith.constant 15 : i32
    %46 = vector.broadcast %c15_i32_10 : i32 to vector<1x256xi32>
    %47 = arith.cmpi slt, %21, %46 : vector<1x256xi32>
    %cst_11 = arith.constant 0.000000e+00 : bf16
    %48 = vector.shape_cast %47 : vector<1x256xi1> to vector<1x256xi1>
    %49 = vector.broadcast %48 : vector<1x256xi1> to vector<4x256xi1>
    %50 = vector.broadcast %cst_11 : bf16 to vector<4x256xbf16>
    %51 = arith.select %49, %45, %50 : vector<4x256xi1>, vector<4x256xbf16>
    %52 = vector.extract_strided_slice %4 {offsets = [0, 32], sizes = [4, 256], strides = [1, 1]} : vector<4x290xbf16> to vector<4x256xbf16>
    %c1_i32_12 = arith.constant 1 : i32
    %53 = vector.broadcast %c1_i32_12 : i32 to vector<1x256xi32>
    %54 = arith.cmpi sge, %21, %53 : vector<1x256xi32>
    %cst_13 = arith.constant 0.000000e+00 : bf16
    %55 = vector.shape_cast %54 : vector<1x256xi1> to vector<1x256xi1>
    %56 = vector.broadcast %55 : vector<1x256xi1> to vector<4x256xi1>
    %57 = vector.broadcast %cst_13 : bf16 to vector<4x256xbf16>
    %58 = arith.select %56, %52, %57 : vector<4x256xi1>, vector<4x256xbf16>
    %59 = vector.extract_strided_slice %4 {offsets = [0, 33], sizes = [4, 256], strides = [1, 1]} : vector<4x290xbf16> to vector<4x256xbf16>
    %60 = vector.extract_strided_slice %4 {offsets = [0, 34], sizes = [4, 256], strides = [1, 1]} : vector<4x290xbf16> to vector<4x256xbf16>
    %c15_i32_14 = arith.constant 15 : i32
    %61 = vector.broadcast %c15_i32_14 : i32 to vector<1x256xi32>
    %62 = arith.cmpi slt, %21, %61 : vector<1x256xi32>
    %cst_15 = arith.constant 0.000000e+00 : bf16
    %63 = vector.shape_cast %62 : vector<1x256xi1> to vector<1x256xi1>
    %64 = vector.broadcast %63 : vector<1x256xi1> to vector<4x256xi1>
    %65 = vector.broadcast %cst_15 : bf16 to vector<4x256xbf16>
    %66 = arith.select %64, %60, %65 : vector<4x256xi1>, vector<4x256xbf16>
    %67 = tpu.concatenate %28, %29, %36, %43, %44, %51, %58, %59, %66 in 0 : vector<4x256xbf16>, vector<4x256xbf16>, vector<4x256xbf16>, vector<4x256xbf16>, vector<4x256xbf16>, vector<4x256xbf16>, vector<4x256xbf16>, vector<4x256xbf16>, vector<4x256xbf16> -> vector<36x256xbf16>
    %c0_16 = arith.constant 0 : index
    %c0_17 = arith.constant 0 : index
    %68 = vector.load %arg2[%c0_16, %c0_17] : memref<8x36xbf16, #tpu.memory_space<vmem>>, vector<8x36xbf16>
    %cst_18 = arith.constant dense<0.000000e+00> : vector<8x256xf32>
    %69 = tpu.matmul %68, %67, %cst_18 {dimension_numbers = #tpu.dot_dimension_numbers<[1], [0], [0], [1], [0, 0, 1, 1], [], []>} : vector<8x36xbf16>, vector<36x256xbf16>, vector<8x256xf32> -> vector<8x256xf32>
    %c0_19 = arith.constant 0 : index
    %c0_20 = arith.constant 0 : index
    %70 = vector.load %arg3[%c0_19, %c0_20] : memref<8x1xf32, #tpu.memory_space<vmem>>, vector<8x1xf32>
    %71 = vector.broadcast %70 : vector<8x1xf32> to vector<8x256xf32>
    %72 = arith.addf %69, %71 : vector<8x256xf32>
    %73 = arith.truncf %72 : vector<8x256xf32> to vector<8x256xbf16>
    %c0_21 = arith.constant 0 : index
    %c0_22 = arith.constant 0 : index
    %c0_23 = arith.constant 0 : index
    %74 = vector.load %arg4[%c0_21, %c0_22, %c0_23] : memref<1x8x256xbf16, #tpu.memory_space<vmem>>, vector<1x8x256xbf16>
    %75 = vector.shape_cast %74 : vector<1x8x256xbf16> to vector<8x256xbf16>
    %76 = vector.shape_cast %73 : vector<8x256xbf16> to vector<1x8x256xbf16>
    tpu.vector_store %arg4[%c0_21, %c0_22, %c0_23], %76 {strides = array<i32>} : memref<1x8x256xbf16, #tpu.memory_space<vmem>>, vector<1x8x256xbf16>,
    %cst_24 = arith.constant dense<0.000000e+00> : vector<8xf32>
    %77 = vector.multi_reduction <add>, %72, %cst_24 [1] : vector<8x256xf32> to vector<8xf32>
    %78 = vector.shape_cast %77 : vector<8xf32> to vector<8x1xf32>
    %79 = arith.mulf %72, %72 : vector<8x256xf32>
    %cst_25 = arith.constant dense<0.000000e+00> : vector<8xf32>
    %80 = vector.multi_reduction <add>, %79, %cst_25 [1] : vector<8x256xf32> to vector<8xf32>
    %81 = vector.shape_cast %80 : vector<8xf32> to vector<8x1xf32>
    %82 = tpu.concatenate %78, %81 in 1 : vector<8x1xf32>, vector<8x1xf32> -> vector<8x2xf32>
    %c0_26 = arith.constant 0 : index
    %c0_27 = arith.constant 0 : index
    %c0_28 = arith.constant 0 : index
    %83 = vector.load %arg5[%c0_26, %c0_27, %c0_28] : memref<1x8x2xf32, #tpu.memory_space<vmem>>, vector<1x8x2xf32>
    %84 = vector.shape_cast %83 : vector<1x8x2xf32> to vector<8x2xf32>
    %85 = vector.shape_cast %82 : vector<8x2xf32> to vector<1x8x2xf32>
    tpu.vector_store %arg5[%c0_26, %c0_27, %c0_28], %85 {strides = array<i32>} : memref<1x8x2xf32, #tpu.memory_space<vmem>>, vector<1x8x2xf32>,
    return
  }
  func.func @transform_0(%arg0: i32) -> (i32, i32, i32) {
    %c0_i32 = arith.constant 0 : i32
    %c0_i32_0 = arith.constant 0 : i32
    %c0_i32_1 = arith.constant 0 : i32
    return %arg0, %c0_i32, %c0_i32_0 : i32, i32, i32
  }
  func.func @transform_1(%arg0: i32) -> (i32, i32) {
    %c0_i32 = arith.constant 0 : i32
    %c0_i32_0 = arith.constant 0 : i32
    %c0_i32_1 = arith.constant 0 : i32
    return %c0_i32, %c0_i32_0 : i32, i32
  }
  func.func @transform_2(%arg0: i32) -> (i32, i32) {
    %c0_i32 = arith.constant 0 : i32
    %c0_i32_0 = arith.constant 0 : i32
    %c0_i32_1 = arith.constant 0 : i32
    return %c0_i32, %c0_i32_0 : i32, i32
  }
  func.func @transform_3(%arg0: i32) -> (i32, i32, i32) {
    %c0_i32 = arith.constant 0 : i32
    %c0_i32_0 = arith.constant 0 : i32
    %c0_i32_1 = arith.constant 0 : i32
    return %arg0, %c0_i32, %c0_i32_0 : i32, i32, i32
  }
  func.func @transform_4(%arg0: i32) -> (i32, i32, i32) {
    %c0_i32 = arith.constant 0 : i32
    %c0_i32_0 = arith.constant 0 : i32
    %c0_i32_1 = arith.constant 0 : i32
    return %arg0, %c0_i32, %c0_i32_0 : i32, i32, i32
  }
}

</mosaic_0001>

<llo_original>
// kernel: tpu_custom_call.1
$region0: #{tpu_custom_call.1}
  #allocation0 [shape = 'u32[]', space=smem, size = 0x4, offset = 0x4, fixed_abs, tag = 'smem constant byte address 0x4 - core index']
  #allocation1 [shape = 'u32[144,128]{1,0:T(1,128)}', space=vmem, size = 0x12000, scoped, tag = 'internal scratch']
  %s0 = inlined_call_operand.hbm [shape: f32[2,4,256], index: 0, kind: input, shape index: {}]
  %s1 = inlined_call_operand.vmem [shape: bf16[8,36], index: 1, kind: input, shape index: {}]
  %s2 = inlined_call_operand.vmem [shape: f32[8,1], index: 2, kind: input, shape index: {}]
  %s3 = inlined_call_operand.hbm [shape: bf16[2,8,256], index: 3, kind: output, shape index: {0}]
  %s4 = inlined_call_operand.vmem [shape: f32[2,8,2], index: 4, kind: output, shape index: {1}]
  %5 = xla_tuple %s3, %s4
  %s6 = sld [smem:[#allocation0]]
  $region57: #{tpu_custom_call.1} parent=0
    _
  %s8 = ssub.s32 1, %s6
  %s9 = scalar_select 0, %s8, %s6
  $region1: #{tpu_custom_call.1} parent=0
    #allocation2 [shape = 'u8[8192]{0}', space=vmem, size = 0x2000, scoped, tag = 'input window, operand 0']
    #allocation3 [shape = 's32[2]{0}', space=sflag, size = 0x8, scoped, tag = 'scoped memory for tpu_custom_call.1']
    #allocation4 [shape = 's32[2]{0}', space=sflag, size = 0x8, scoped, tag = 'scoped memory for tpu_custom_call.1']
    #allocation5 [shape = 'u8[8192]{0}', space=vmem, size = 0x2000, scoped, tag = 'output window, operand 0']
    %10 = vsyncpa [#allocation3], 0
    %s11 = scalar_lea.sflag [#allocation3], 1
    %12 = vsyncpa %s11, 0
    %13 = vsyncpa [#allocation4], 0
    %s14 = scalar_lea.sflag [#allocation4], 1
    %15 = vsyncpa %s14, 0
    loop: start=0, step=1, limit=4
    $region2: #{tpu_custom_call.1} parent=1 // loop_pre_header
      _
    $region3: #{tpu_custom_call.1} parent=1 // loop_header
      %s17 = sphi 0, %s21
      %p18 = scmp.ge.s32.totalorder %s17, 4
      %s27 = sphi 0, %s29
      %s30 = sphi 0, %s27
      %s31 = sphi 0, %s30
      %s47 = sphi 0, %s31
      %s51 = sphi 0, %s51
      %s53 = sphi 0, %s51
      %s54 = sphi 0, %s53
      %s68 = sphi 0, %s54
      %s72 = sphi 0, %s72
      %s74 = sphi 0, %s72
      %s75 = sphi 0, %s74
      %s89 = sphi 0, %s75
      %s95 = sphi 0, %s97
      %s98 = sphi 0, %s95
      %s99 = sphi 0, %s98
      %s115 = sphi 0, %s99
      %s121 = sphi 0, %s123
      %s124 = sphi 0, %s121
      %s125 = sphi 0, %s124
      %s141 = sphi 0, %s125
    $region4: #{tpu_custom_call.1} parent=1 // loop_header_branch
      %20 = sbr.rel (%p18) target = $region8
    $region5: #{tpu_custom_call.1} parent=1 // loop_body
      %s22 = ssub.s32 %s17, 1
      %s23 = ssub.s32 %s17, 2
      %s24 = sadd.s32 %s17, 1
      %s25 = ssub.s32 %s17, %s24
      %p26 = scmp.eq.s32.totalorder %s25, 0
      %s28 = sadd.s32 %s27, 1
      %s29 = scalar_select %p26, %s27, %s28
      %p32 = pneg %p26
      %p33 = scmp.eq.s32.totalorder %s17, 1
      %p34 = por %p32, %p33
      %p35 = scmp.ne.s32.totalorder %s27, %s30
      %p36 = scmp.eq.s32.totalorder %s17, 0
      %p37 = por %p35, %p36
      %p38 = scmp.ne.s32.totalorder %s27, %s30
      %p39 = scmp.eq.s32.totalorder %s22, 1
      %p40 = por %p38, %p39
      %p41 = scmp.ne.s32.totalorder %s30, %s31
      %p42 = scmp.eq.s32.totalorder %s22, 0
      %p43 = por %p41, %p42
      %p44 = scmp.ne.s32.totalorder %s30, %s31
      %p45 = scmp.eq.s32.totalorder %s23, 1
      %p46 = por %p44, %p45
      %p48 = scmp.ne.s32.totalorder %s31, %s47
      %p49 = scmp.eq.s32.totalorder %s23, 0
      %p50 = por %p48, %p49
      %s52 = sadd.s32 %s51, 1
      %p55 = scmp.eq.s32.totalorder %s17, 1
      %p56 = scmp.ne.s32.totalorder %s51, %s53
      %p57 = scmp.eq.s32.totalorder %s17, 0
      %p58 = por %p56, %p57
      %p59 = scmp.ne.s32.totalorder %s51, %s53
      %p60 = scmp.eq.s32.totalorder %s22, 1
      %p61 = por %p59, %p60
      %p62 = scmp.ne.s32.totalorder %s53, %s54
      %p63 = scmp.eq.s32.totalorder %s22, 0
      %p64 = por %p62, %p63
      %p65 = scmp.ne.s32.totalorder %s53, %s54
      %p66 = scmp.eq.s32.totalorder %s23, 1
      %p67 = por %p65, %p66
      %p69 = scmp.ne.s32.totalorder %s54, %s68
      %p70 = scmp.eq.s32.totalorder %s23, 0
      %p71 = por %p69, %p70
      %s73 = sadd.s32 %s72, 1
      %p76 = scmp.eq.s32.totalorder %s17, 1
      %p77 = scmp.ne.s32.totalorder %s72, %s74
      %p78 = scmp.eq.s32.totalorder %s17, 0
      %p79 = por %p77, %p78
      %p80 = scmp.ne.s32.totalorder %s72, %s74
      %p81 = scmp.eq.s32.totalorder %s22, 1
      %p82 = por %p80, %p81
      %p83 = scmp.ne.s32.totalorder %s74, %s75
      %p84 = scmp.eq.s32.totalorder %s22, 0
      %p85 = por %p83, %p84
      %p86 = scmp.ne.s32.totalorder %s74, %s75
      %p87 = scmp.eq.s32.totalorder %s23, 1
      %p88 = por %p86, %p87
      %p90 = scmp.ne.s32.totalorder %s75, %s89
      %p91 = scmp.eq.s32.totalorder %s23, 0
      %p92 = por %p90, %p91
      %s93 = ssub.s32 %s17, %s24
      %p94 = scmp.eq.s32.totalorder %s93, 0
      %s96 = sadd.s32 %s95, 1
      %s97 = scalar_select %p94, %s95, %s96
      %p100 = pneg %p94
      %p101 = scmp.eq.s32.totalorder %s17, 1
      %p102 = por %p100, %p101
      %p103 = scmp.ne.s32.totalorder %s95, %s98
      %p104 = scmp.eq.s32.totalorder %s17, 0
      %p105 = por %p103, %p104
      %p106 = scmp.ne.s32.totalorder %s95, %s98
      %p107 = scmp.eq.s32.totalorder %s22, 1
      %p108 = por %p106, %p107
      %p109 = scmp.ne.s32.totalorder %s98, %s99
      %p110 = scmp.eq.s32.totalorder %s22, 0
      %p111 = por %p109, %p110
      %p112 = scmp.ne.s32.totalorder %s98, %s99
      %p113 = scmp.eq.s32.totalorder %s23, 1
      %p114 = por %p112, %p113
      %p116 = scmp.ne.s32.totalorder %s99, %s115
      %p117 = scmp.eq.s32.totalorder %s23, 0
      %p118 = por %p116, %p117
      %s119 = ssub.s32 %s17, %s24
      %p120 = scmp.eq.s32.totalorder %s119, 0
      %s122 = sadd.s32 %s121, 1
      %s123 = scalar_select %p120, %s121, %s122
      %p126 = pneg %p120
      %p127 = scmp.eq.s32.totalorder %s17, 1
      %p128 = por %p126, %p127
      %p129 = scmp.ne.s32.totalorder %s121, %s124
      %p130 = scmp.eq.s32.totalorder %s17, 0
      %p131 = por %p129, %p130
      %p132 = scmp.ne.s32.totalorder %s121, %s124
      %p133 = scmp.eq.s32.totalorder %s22, 1
      %p134 = por %p132, %p133
      %p135 = scmp.ne.s32.totalorder %s124, %s125
      %p136 = scmp.eq.s32.totalorder %s22, 0
      %p137 = por %p135, %p136
      %p138 = scmp.ne.s32.totalorder %s124, %s125
      %p139 = scmp.eq.s32.totalorder %s23, 1
      %p140 = por %p138, %p139
      %p142 = scmp.ne.s32.totalorder %s125, %s141
      %p143 = scmp.eq.s32.totalorder %s23, 0
      %p144 = por %p142, %p143
      %p145 = scmp.le.s32.totalorder 1, %s17
      %p146 = scmp.lt.s32.totalorder %s17, 3
      %p147 = pnand %p145, %p146
      %p148 = pneg %p147
      // Predicated region
      $region9: #{tpu_custom_call.1} parent=5 // pred_check
        _
      $region10: #{tpu_custom_call.1} parent=5 // pred_check_branch
        %150 = sbr.rel (%p147) target = $region12
      $region11: #{tpu_custom_call.1} parent=5 // pred_region
        %s151 = ssub.s32 %s17, 1
        // Predicated region
        $region13: #{tpu_custom_call.1} parent=11 // pred_check
          %p152 = pneg %p64
        $region14: #{tpu_custom_call.1} parent=11 // pred_check_branch
          %154 = sbr.rel (%p152) target = $region16
        $region15: #{tpu_custom_call.1} parent=11 // pred_region
          _
        $region16: #{tpu_custom_call.1} parent=11 // pred_fallthru
          _
        // Predicated region
        $region17: #{tpu_custom_call.1} parent=11 // pred_check
          %p155 = pneg %p85
        $region18: #{tpu_custom_call.1} parent=11 // pred_check_branch
          %157 = sbr.rel (%p155) target = $region20
        $region19: #{tpu_custom_call.1} parent=11 // pred_region
          _
        $region20: #{tpu_custom_call.1} parent=11 // pred_fallthru
          _
      $region12: #{tpu_custom_call.1} parent=5 // pred_fallthru
        _
      %p158 = scmp.lt.s32.totalorder %s17, 2
      // Predicated region
      $region21: #{tpu_custom_call.1} parent=5 // pred_check
        %p159 = pneg %p158
      $region22: #{tpu_custom_call.1} parent=5 // pred_check_branch
        %161 = sbr.rel (%p159) target = $region24
      $region23: #{tpu_custom_call.1} parent=5 // pred_region
        // Predicated region
        $region25: #{tpu_custom_call.1} parent=23 // pred_check
          %p162 = pneg %p37
        $region26: #{tpu_custom_call.1} parent=23 // pred_check_branch
          %164 = sbr.rel (%p162) target = $region28
        $region27: #{tpu_custom_call.1} parent=23 // pred_region
          %s165 = sand.u32 %s27, 1
          %s166 = scalar_lea.sflag [#allocation3], %s165
          %s167 = sand.u32 %s27, 1
          %s168 = smul.addr %s167, 8
          %s169 = scalar_lea.vmem [#allocation2], %s168
          %s171 = ssub.s32 128, 128
          %172 = vsyncadd %s166, %s171
          %s173 = smul.addr %s17, 2
          %s174 = smul.addr %s173, 64
          %s175 = scalar_lea.hbm %s0, %s174
          %s177 = sshll.u32 %s169, 4
          %s178 = int_to_ptr.vmem [resolvable:$true] %s177
          %180 = dma.hbm_to_vmem [thread:$0]  %s175, 128, %s178, %s166
        $region28: #{tpu_custom_call.1} parent=23 // pred_fallthru
          _
      $region24: #{tpu_custom_call.1} parent=5 // pred_fallthru
        _
      %p181 = scmp.le.s32.totalorder 1, %s17
      %p182 = scmp.lt.s32.totalorder %s17, 3
      %p183 = pnand %p181, %p182
      %p184 = pneg %p183
      // Predicated region
      $region29: #{tpu_custom_call.1} parent=5 // pred_check
        _
      $region30: #{tpu_custom_call.1} parent=5 // pred_check_branch
        %186 = sbr.rel (%p183) target = $region32
      $region31: #{tpu_custom_call.1} parent=5 // pred_region
        %s187 = ssub.s32 %s17, 1
        %s188 = sand.u32 %s30, 1
        %s189 = scalar_lea.sflag [#allocation3], %s188
        %s190 = sand.u32 %s30, 1
        %s191 = smul.addr %s190, 8
        %s192 = scalar_lea.vmem [#allocation2], %s191
        // Predicated region
        $region33: #{tpu_custom_call.1} parent=31 // pred_check
          %p193 = pneg %p43
        $region34: #{tpu_custom_call.1} parent=31 // pred_check_branch
          %195 = sbr.rel (%p193) target = $region36
        $region35: #{tpu_custom_call.1} parent=31 // pred_region
          %196 = dma.done %s189, 128
        $region36: #{tpu_custom_call.1} parent=31 // pred_fallthru
          _
        %s197 = sand.u32 %s30, 1
        %s198 = scalar_lea.sflag [#allocation3], %s197
        %s199 = sand.u32 %s30, 1
        %s200 = smul.addr %s199, 8
        %s201 = scalar_lea.vmem [#allocation2], %s200
        %p202 = pneg %p43
        %p203 = pneg %p40
        %p204 = pneg %p64
        %p205 = pneg %p61
        %p206 = pneg %p85
        %p207 = pneg %p82
        %p208 = pneg %p111
        %p209 = pneg %p108
        %s210 = sand.u32 %s98, 1
        %s211 = scalar_lea.sflag [#allocation4], %s210
        %s212 = sand.u32 %s98, 1
        %s213 = smul.addr %s212, 8
        %s214 = scalar_lea.vmem [#allocation5], %s213
        %p215 = pneg %p137
        %p216 = pneg %p134
        %p217 = scmp.lt.s32.totalorder %s22, 1
        %s218 = scalar_select %p217, %s22, 1
        %s219 = smul.addr %s218, 8
        %s220 = scalar_lea.vmem %s4, %s219
        %p221 = scmp.lt.s32.totalorder %s22, 1
        %s222 = scalar_select %p221, %s22, 1
        %s223 = smul.addr %s222, 8
        %s224 = scalar_lea.vmem %s4, %s223
        %v228 = vld [vmem:[%s192] sm:$0xff]
        %v230 = vcombine.high %v228, %v228
        %v232 = vpack.c.bf16 %v228, %v228
        %v233 = vpack.c.bf16 %v230, %v230
        %236 = vrot.lane.b32.xlu0 %v232, 17
        %v237 = vpop.permute.xlu0 %236
        %238 = vrot.lane.b32.xlu0 %v233, 17
        %v239 = vpop.permute.xlu0 %238
        %vm240 = vcmask 138240
        %v241 = vsel %vm240, %v237, %v239
        %vm243 = vcmask 138240
        %v246 = vsel %vm243, 0, %v237
        %v249 = vsel %vm243, %v239, 0
        %v251 = vlaneseq
        %v252 = vand.u32 %v251, 127
        %v253 = vadd.s32 %v252, 128
        %vm254 = vcmp.lt.s32.totalorder %v252, 0
        %v255 = vsub.s32 0, %v252
        %v256 = vsel %vm254, %v255, %v252
        %v257 = vshrl.u32 %v256, 4
        %v258 = vand.u32 %v256, 15
        %v259 = vsub.s32 0, %v258
        %v260 = vsel %vm254, %v259, %v258
        %vm261 = vcmp.lt.s32.totalorder %v253, 0
        %v262 = vsub.s32 0, %v253
        %v263 = vsel %vm261, %v262, %v253
        %v264 = vshrl.u32 %v263, 4
        %v265 = vand.u32 %v263, 15
        %v266 = vsub.s32 0, %v265
        %v267 = vsel %vm261, %v266, %v265
        %vm268 = vcmp.ne.s32.totalorder %v260, 0
        %vm269 = vcmp.ne.s32.totalorder %v267, 0
        %vm270 = vcmp.lt.s32.totalorder %v260, 0
        %vm271 = vcmp.lt.s32.totalorder %v267, 0
        %vm272 = vmand %vm270, %vm268
        %vm273 = vmand %vm271, %vm269
        %v274 = vadd.s32 %v260, 16
        %v275 = vadd.s32 %v267, 16
        %v276 = vsel %vm272, %v274, %v260
        %v277 = vsel %vm273, %v275, %v267
        %vm278 = vcmp.ge.s32.totalorder %v276, 1
        %vm279 = vcmp.ge.s32.totalorder %v277, 1
        %v280 = vsel %vm278, 1, 0
        %v281 = vsel %vm279, 1, 0
        %vm282 = vcmp.eq.s32.totalorder %v280, 1
        %vm283 = vcmp.eq.s32.totalorder %v281, 1
        %vm284 = vmpackc.low %vm283, %vm282
        %v285 = vsel %vm284, 65537, 0
        %v286 = vlaneseq
        %v287 = vshrl.u32 %v286, 7
        %v288 = vsub.s32 0, %v287
        %v289 = vrot.slane %v285, %v288
        %v290 = vlaneseq
        %v291 = vshrl.u32 %v290, 7
        %v292 = vsub.s32 4, %v291
        %v293 = vrot.slane %v285, %v292
        %vm294 = vcmp.ne.s16.totalorder %v289, 0
        %vm295 = vcmp.ne.s16.totalorder %v293, 0
        %v296 = vsel %vm294, %v246, 0
        %v297 = vsel %vm295, %v241, 0
        %vm298 = vcmp.lt.s32.totalorder %v276, 15
        %vm299 = vcmp.lt.s32.totalorder %v277, 15
        %v300 = vsel %vm298, 1, 0
        %v301 = vsel %vm299, 1, 0
        %vm302 = vcmp.eq.s32.totalorder %v300, 1
        %vm303 = vcmp.eq.s32.totalorder %v301, 1
        %vm304 = vmpackc.low %vm303, %vm302
        %v305 = vsel %vm304, 65537, 0
        %v306 = vlaneseq
        %v307 = vshrl.u32 %v306, 7
        %v308 = vsub.s32 0, %v307
        %v309 = vrot.slane %v305, %v308
        %v310 = vlaneseq
        %v311 = vshrl.u32 %v310, 7
        %v312 = vsub.s32 4, %v311
        %v313 = vrot.slane %v305, %v312
        %314 = vrot.lane.b32.xlu0 %v309, 2
        %v315 = vpop.permute.xlu0 %314
        %316 = vrot.lane.b32.xlu0 %v313, 2
        %v317 = vpop.permute.xlu0 %316
        %vm318 = vcmask 15360
        %v319 = vsel %vm318, %v315, %v317
        %vm320 = vcmp.ne.s16.totalorder %v315, 0
        %vm321 = vcmp.ne.s16.totalorder %v319, 0
        %vm322 = vcmp.ne.s16.totalorder %v317, 0
        %v323 = vsel %vm320, %v246, 0
        %v324 = vsel %vm321, %v241, 0
        %v325 = vsel %vm322, %v249, 0
        %326 = vrot.lane.b32.xlu0 %v289, 16
        %v327 = vpop.permute.xlu0 %326
        %328 = vrot.lane.b32.xlu0 %v293, 16
        %v329 = vpop.permute.xlu0 %328
        %vm330 = vcmask 130048
        %v331 = vsel %vm330, %v327, %v329
        %vm332 = vcmp.ne.s16.totalorder %v327, 0
        %vm333 = vcmp.ne.s16.totalorder %v331, 0
        %vm334 = vcmp.ne.s16.totalorder %v329, 0
        %v335 = vsel %vm332, %v246, 0
        %v336 = vsel %vm333, %v241, 0
        %v337 = vsel %vm334, %v249, 0
        %338 = vrot.lane.b32.xlu0 %v309, 18
        %v339 = vpop.permute.xlu0 %338
        %340 = vrot.lane.b32.xlu0 %v313, 18
        %v341 = vpop.permute.xlu0 %340
        %vm342 = vcmask 146432
        %v343 = vsel %vm342, %v339, %v341
        %vm344 = vcmp.ne.s16.totalorder %v339, 0
        %vm345 = vcmp.ne.s16.totalorder %v343, 0
        %vm346 = vcmp.ne.s16.totalorder %v341, 0
        %v347 = vsel %vm344, %v246, 0
        %v348 = vsel %vm345, %v241, 0
        %v349 = vsel %vm346, %v249, 0
        %350 = vrot.lane.b32.xlu0 %v289, 32
        %v351 = vpop.permute.xlu0 %350
        %352 = vrot.lane.b32.xlu0 %v293, 32
        %v353 = vpop.permute.xlu0 %352
        %vm354 = vcmask 261120
        %v355 = vsel %vm354, %v351, %v353
        %vm356 = vcmp.ne.s16.totalorder %v351, 0
        %vm357 = vcmp.ne.s16.totalorder %v355, 0
        %vm358 = vcmp.ne.s16.totalorder %v353, 0
        %v359 = vsel %vm356, %v246, 0
        %v360 = vsel %vm357, %v241, 0
        %v361 = vsel %vm358, %v249, 0
        %362 = vrot.lane.b32.xlu0 %v309, 34
        %v363 = vpop.permute.xlu0 %362
        %364 = vrot.lane.b32.xlu0 %v313, 34
        %v365 = vpop.permute.xlu0 %364
        %vm366 = vcmask 277504
        %v367 = vsel %vm366, %v363, %v365
        %vm368 = vcmp.ne.s16.totalorder %v363, 0
        %vm369 = vcmp.ne.s16.totalorder %v367, 0
        %vm370 = vcmp.ne.s16.totalorder %v365, 0
        %v371 = vsel %vm368, %v246, 0
        %v372 = vsel %vm369, %v241, 0
        %v373 = vsel %vm370, %v249, 0
        %v376 = vrot.slane %v246, 6
        %v377 = vrot.slane %v241, 6
        %v378 = vrot.slane %v249, 6
        %379 = vrot.lane.b32.xlu0 %v376, 127
        %v380 = vpop.permute.xlu0 %379
        %381 = vrot.lane.b32.xlu0 %v377, 127
        %v382 = vpop.permute.xlu0 %381
        %383 = vrot.lane.b32.xlu0 %v378, 127
        %v384 = vpop.permute.xlu0 %383
        %vm385 = vcmask 1039360
        %v386 = vsel %vm385, %v380, %v382
        %v387 = vsel %vm385, %v382, %v384
        %v391 = vrot.slane %v323, 4
        %v392 = vrot.slane %v324, 4
        %v393 = vrot.slane %v325, 4
        %394 = vrot.lane.b32.xlu0 %v391, 126
        %v395 = vpop.permute.xlu0 %394
        %396 = vrot.lane.b32.xlu0 %v392, 126
        %v397 = vpop.permute.xlu0 %396
        %398 = vrot.lane.b32.xlu0 %v393, 126
        %v399 = vpop.permute.xlu0 %398
        %vm400 = vcmask 1031168
        %v401 = vsel %vm400, %v395, %v397
        %v402 = vsel %vm400, %v397, %v399
        %v406 = vrot.slane %v335, 2
        %v407 = vrot.slane %v336, 2
        %v408 = vrot.slane %v337, 2
        %409 = vrot.lane.b32.xlu0 %v406, 112
        %v410 = vpop.permute.xlu0 %409
        %411 = vrot.lane.b32.xlu0 %v407, 112
        %v412 = vpop.permute.xlu0 %411
        %413 = vrot.lane.b32.xlu0 %v408, 112
        %v414 = vpop.permute.xlu0 %413
        %vm415 = vcmask 916480
        %v416 = vsel %vm415, %v410, %v412
        %v417 = vsel %vm415, %v412, %v414
        %418 = vrot.lane.b32.xlu0 %v246, 111
        %v419 = vpop.permute.xlu0 %418
        %420 = vrot.lane.b32.xlu0 %v241, 111
        %v421 = vpop.permute.xlu0 %420
        %422 = vrot.lane.b32.xlu0 %v249, 111
        %v423 = vpop.permute.xlu0 %422
        %vm424 = vcmask 908288
        %v425 = vsel %vm424, %v419, %v421
        %v426 = vsel %vm424, %v421, %v423
        %v430 = vrot.slane %v347, 6
        %v431 = vrot.slane %v348, 6
        %v432 = vrot.slane %v349, 6
        %433 = vrot.lane.b32.xlu0 %v430, 110
        %v434 = vpop.permute.xlu0 %433
        %435 = vrot.lane.b32.xlu0 %v431, 110
        %v436 = vpop.permute.xlu0 %435
        %437 = vrot.lane.b32.xlu0 %v432, 110
        %v438 = vpop.permute.xlu0 %437
        %vm439 = vcmask 900096
        %v440 = vsel %vm439, %v434, %v436
        %v441 = vsel %vm439, %v436, %v438
        %v445 = vrot.slane %v359, 4
        %v446 = vrot.slane %v360, 4
        %v447 = vrot.slane %v361, 4
        %448 = vrot.lane.b32.xlu0 %v445, 96
        %v449 = vpop.permute.xlu0 %448
        %450 = vrot.lane.b32.xlu0 %v446, 96
        %v451 = vpop.permute.xlu0 %450
        %452 = vrot.lane.b32.xlu0 %v447, 96
        %v453 = vpop.permute.xlu0 %452
        %vm454 = vcmask 785408
        %v455 = vsel %vm454, %v449, %v451
        %v456 = vsel %vm454, %v451, %v453
        %v457 = vrot.slane %v246, 2
        %v458 = vrot.slane %v241, 2
        %v459 = vrot.slane %v249, 2
        %460 = vrot.lane.b32.xlu0 %v457, 95
        %v461 = vpop.permute.xlu0 %460
        %462 = vrot.lane.b32.xlu0 %v458, 95
        %v463 = vpop.permute.xlu0 %462
        %464 = vrot.lane.b32.xlu0 %v459, 95
        %v465 = vpop.permute.xlu0 %464
        %vm466 = vcmask 777216
        %v467 = vsel %vm466, %v461, %v463
        %v468 = vsel %vm466, %v463, %v465
        %472 = vrot.lane.b32.xlu0 %v371, 94
        %v473 = vpop.permute.xlu0 %472
        %474 = vrot.lane.b32.xlu0 %v372, 94
        %v475 = vpop.permute.xlu0 %474
        %476 = vrot.lane.b32.xlu0 %v373, 94
        %v477 = vpop.permute.xlu0 %476
        %vm478 = vcmask 769024
        %v479 = vsel %vm478, %v473, %v475
        %v480 = vsel %vm478, %v475, %v477
        %vm481 = vcmask 1041408
        %v484 = vsel %vm481, %v296, %v386
        %v487 = vsel %vm481, %v297, %v387
        %vm488 = vcmask 1043456
        %v490 = vsel %vm488, %v484, %v401
        %v492 = vsel %vm488, %v487, %v402
        %vm493 = vcmask 1045504
        %v495 = vsel %vm493, %v490, %v416
        %v498 = vsel %vm493, %v492, %v417
        %v502 = vsel %vm481, %v425, %v440
        %v505 = vsel %vm481, %v426, %v441
        %v507 = vsel %vm488, %v502, %v455
        %v509 = vsel %vm488, %v505, %v456
        %v511 = vsel %vm493, %v507, %v467
        %v514 = vsel %vm493, %v509, %v468
        %v516 = vld [vmem:[%s1] sm:$0xf]
        %v517 = vld [vmem:[%s2] sm:$0xff]
        %519 = vset.pattern.permute.xlu0 0
        %520 = vperm.xlu0 %519, %v517
        %v521 = vpop.permute.xlu0 %520
        %vm523 = vcmask 293888
        %v525 = vsel %vm523, %v516, 0
        %v528 = vsel %vm481, %v479, 0
        %v531 = vsel %vm481, %v480, 0
        %533 = vmatprep.subr.bf16.mxu0 %v498
        %534 = vmatpush1.bf16.msra.mxu0 %v495
        %535 = vmatprep.subr.bf16.mxu0 %v514
        %536 = vmatpush1.bf16.msra.mxu0 %v511
        %537 = vmatprep.subr.bf16.mxu0 %v531
        %538 = vmatpush1.bf16.msra.mxu0 %v528
        %539 = vmatprep.subr.bf16.mxu0 0
        %540 = vmatpush1.bf16.msra.mxu0 0
        %541 = vmatprep.subr.bf16.mxu0 0
        %542 = vmatpush1.bf16.msra.mxu0 0
        %543 = vmatprep.subr.bf16.mxu0 0
        %544 = vmatpush1.bf16.msra.mxu0 0
        %545 = vmatprep.subr.bf16.mxu0 0
        %546 = vmatpush1.bf16.msra.mxu0 0
        %547 = vmatprep.subr.bf16.mxu0 0
        %548 = vmatpush1.bf16.msra.mxu0 0
        %549 = vmatprep.subr.bf16.mxu0 0
        %550 = vmatpush1.bf16.msra.mxu0 0
        %551 = vmatprep.subr.bf16.mxu0 0
        %552 = vmatpush1.bf16.msra.mxu0 0
        %553 = vmatprep.subr.bf16.mxu0 0
        %554 = vmatpush1.bf16.msra.mxu0 0
        %555 = vmatprep.subr.bf16.mxu0 0
        %556 = vmatpush1.bf16.msra.mxu0 0
        %557 = vmatprep.subr.bf16.mxu0 0
        %558 = vmatpush1.bf16.msra.mxu0 0
        %559 = vmatprep.subr.bf16.mxu0 0
        %560 = vmatpush1.bf16.msra.mxu0 0
        %561 = vmatprep.subr.bf16.mxu0 0
        %562 = vmatpush1.bf16.msra.mxu0 0
        %563 = vmatprep.subr.bf16.mxu0 0
        %564 = vmatpush1.bf16.msra.mxu0 0
        %565 = vmatprep.mubr.bf16.mxu0 0
        %566 = vmatmul.mubr.bf16.gmra.mrb[0].mxu0 %v525
        %v567 = vpop.f32.mrb[0].mxu0
        %v568 = vadd.f32 %v521, %v567
        %v569 = vpop.f32.mrb[0].mxu0
        %v570 = vadd.f32 %v521, %v569
        %v571 = vpop.f32.mrb[0].mxu0
        %v572 = vpop.f32.mrb[0].mxu0
        %573 = vdwg.mxu0
        %v574 = vpack.c.bf16 %v568, %v568
        %v575 = vpack.c.bf16 %v570, %v570
        %v578 = vunpack.c.l.b16 %v574
        %v579 = vunpack.c.l.b16 %v575
        %v580 = vpack.c.b16 %v579, %v578
        %582 = vst [vmem:[%s214] sm:$0xff] %v580
        %v583 = vadd.f32 %v568, %v570
        %584 = vadd.xlane.f32.xlu0 %v583
        %v585 = vpop.xlane.xlu0 %584
        %v586 = vmul.f32 %v568, %v568
        %v587 = vmul.f32 %v570, %v570
        %v588 = vadd.f32 %v586, %v587
        %589 = vadd.xlane.f32.xlu0 %v588
        %v590 = vpop.xlane.xlu0 %589
        %vm591 = vcmask 7168
        %v592 = vsel %vm591, %v585, %v590
        %vm593 = vcmask 15360
        %594 = vst.msk [vmem:[%s224] sm:$0xff] %vm593, %v592
        %s595 = sand.u32 %s98, 1
        %s596 = scalar_lea.sflag [#allocation4], %s595
        %s597 = sand.u32 %s98, 1
        %s598 = smul.addr %s597, 8
        %s599 = scalar_lea.vmem [#allocation5], %s598
        %p600 = scmp.lt.s32.totalorder %s22, 1
        %s601 = scalar_select %p600, %s22, 1
        %s602 = smul.addr %s601, 8
        %s603 = scalar_lea.vmem %s4, %s602
        // Predicated region
        $region37: #{tpu_custom_call.1} parent=31 // pred_check
          %p604 = pneg %p108
        $region38: #{tpu_custom_call.1} parent=31 // pred_check_branch
          %606 = sbr.rel (%p604) target = $region40
        $region39: #{tpu_custom_call.1} parent=31 // pred_region
          %s608 = ssub.s32 128, 128
          %609 = vsyncadd %s596, %s608
          %s610 = smul.addr %s22, 2
          %s611 = smul.addr %s610, 64
          %s612 = scalar_lea.hbm %s3, %s611
          %s614 = sshll.u32 %s599, 4
          %s615 = int_to_ptr.vmem [resolvable:$true] %s614
          %617 = dma.vmem_to_hbm [thread:$0]  %s615, 128, %s612, %s596
        $region40: #{tpu_custom_call.1} parent=31 // pred_fallthru
          _
        // Predicated region
        $region41: #{tpu_custom_call.1} parent=31 // pred_check
          %p618 = pneg %p134
        $region42: #{tpu_custom_call.1} parent=31 // pred_check_branch
          %620 = sbr.rel (%p618) target = $region44
        $region43: #{tpu_custom_call.1} parent=31 // pred_region
          _
        $region44: #{tpu_custom_call.1} parent=31 // pred_fallthru
          _
      $region32: #{tpu_custom_call.1} parent=5 // pred_fallthru
        _
      %p621 = scmp.le.s32.totalorder 2, %s17
      // Predicated region
      $region45: #{tpu_custom_call.1} parent=5 // pred_check
        %p622 = pneg %p621
      $region46: #{tpu_custom_call.1} parent=5 // pred_check_branch
        %624 = sbr.rel (%p622) target = $region48
      $region47: #{tpu_custom_call.1} parent=5 // pred_region
        %s625 = ssub.s32 %s17, 2
        // Predicated region
        $region49: #{tpu_custom_call.1} parent=47 // pred_check
          %p626 = pneg %p114
        $region50: #{tpu_custom_call.1} parent=47 // pred_check_branch
          %628 = sbr.rel (%p626) target = $region52
        $region51: #{tpu_custom_call.1} parent=47 // pred_region
          %s629 = sand.u32 %s99, 1
          %s630 = scalar_lea.sflag [#allocation4], %s629
          %s631 = sand.u32 %s99, 1
          %s632 = smul.addr %s631, 8
          %s633 = scalar_lea.vmem [#allocation5], %s632
          %634 = dma.done %s630, 128
        $region52: #{tpu_custom_call.1} parent=47 // pred_fallthru
          _
        // Predicated region
        $region53: #{tpu_custom_call.1} parent=47 // pred_check
          %p635 = pneg %p140
        $region54: #{tpu_custom_call.1} parent=47 // pred_check_branch
          %637 = sbr.rel (%p635) target = $region56
        $region55: #{tpu_custom_call.1} parent=47 // pred_region
          %p638 = scmp.lt.s32.totalorder %s23, 1
          %s639 = scalar_select %p638, %s23, 1
          %s640 = smul.addr %s639, 8
          %s641 = scalar_lea.vmem %s4, %s640
        $region56: #{tpu_custom_call.1} parent=47 // pred_fallthru
          _
      $region48: #{tpu_custom_call.1} parent=5 // pred_fallthru
        _
    $region6: #{tpu_custom_call.1} parent=1 // loop_footer
      %s21 = sadd.s32 1, %s17
    $region7: #{tpu_custom_call.1} parent=1 // loop_footer_branch
      %16 = sbr.rel target = $region3
    $region8: #{tpu_custom_call.1} parent=1 // loop_exit
      _
    %642 = vsyncpa [#allocation3], 1
    %s643 = scalar_lea.sflag [#allocation3], 1
    %644 = vsyncpa %s643, 1
    %645 = vsyncpa [#allocation4], 1
    %s646 = scalar_lea.sflag [#allocation4], 1
    %647 = vsyncpa %s646, 1

</llo_original>
